<compile_context>
chip_gen: v5e
topology: v5e:2x2
jax: 0.10.0
libtpu: 0.0.40
codegen_flags: <defaults>
</compile_context>

<pallas_src>
import functools

import jax
import jax.numpy as jnp
from jax.experimental import pallas as pl
from jax.experimental.pallas import tpu as pltpu


def _conv_matmul_kernel(*refs, apply_affine, apply_relu):
    """One grid step: o[n, :, m*TM:(m+1)*TM] = act(W @ P * scale + shift).

    refs (in order):
      p_ref     : (1, K, TILE_M)    im2col patches, compute dtype
      w_ref     : (Cout, K)         conv weights reshaped to 2-D, compute dtype
      [scale_ref: (Cout, 1) f32]    only when apply_affine
      [shift_ref: (Cout, 1) f32]    only when apply_affine
      o_ref     : (1, Cout, TILE_M) output tile (lane-dense trailing spatial dim)
    """
    if apply_affine:
        p_ref, w_ref, scale_ref, shift_ref, o_ref = refs
    else:
        p_ref, w_ref, o_ref = refs
        scale_ref = shift_ref = None

    # Single matmul over the whole K = KH*KW*Cin contraction; the f32 accumulator
    # stays in vregs / the MXU result buffer -- no VMEM scratch round trips.
    acc = jnp.dot(w_ref[...], p_ref[0], preferred_element_type=jnp.float32)

    if apply_affine:           # folded BN (inference form) and/or conv bias
        acc = acc * scale_ref[...] + shift_ref[...]
    if apply_relu:
        acc = jnp.maximum(acc, 0.0)
    o_ref[0] = acc.astype(o_ref.dtype)   # one store of the finished tile


def _ceil_to(a, b):
    return -(-a // b) * b


def _tile_vmem_bytes(rows, cols, itemsize):
    """Physical VMEM bytes of a (rows, cols) tile: lanes pad to 128, sublanes to
    8 32-bit rows (i.e. 8 * (4 // itemsize) rows for sub-32-bit packed dtypes)."""
    sublane = 8 * max(1, 4 // itemsize)
    return _ceil_to(max(rows, 1), sublane) * _ceil_to(max(cols, 1), 128) * itemsize


def _est_vmem_bytes(k, tile_m, cout, cdt_size, out_size, apply_affine):
    est = 2 * _tile_vmem_bytes(k, tile_m, cdt_size)        # patch tile, double-buffered
    est += 2 * _tile_vmem_bytes(cout, k, cdt_size)         # grid-resident weights
    est += 2 * _tile_vmem_bytes(cout, tile_m, out_size)    # output tile, double-buffered
    if apply_affine:
        est += 4 * _tile_vmem_bytes(cout, 1, 4)            # scale + shift
    return est


def basic_conv_forward(
    x_nchw,
    weight_oihw,
    *,
    stride=1,
    padding=0,
    relu=True,
    bn=False,
    bias=None,
    bn_gamma=None,
    bn_beta=None,
    bn_mean=None,
    bn_var=None,
    bn_eps=1e-5,
    compute_dtype=jnp.bfloat16,
    tile_m_cap=512,
):
    """Pallas implementation of BasicConv.forward.  Input/output are NCHW."""
    N, Cin, H, W = x_nchw.shape
    Cout, Cin_w, KH, KW = weight_oihw.shape
    assert Cin == Cin_w
    assert stride >= 1 and padding >= 0

    Ho = (H + 2 * padding - KH) // stride + 1
    Wo = (W + 2 * padding - KW) // stride + 1
    K = KH * KW * Cin
    M = Ho * Wo

    out_dtype = x_nchw.dtype
    cdt_size = jnp.dtype(compute_dtype).itemsize
    out_size = jnp.dtype(out_dtype).itemsize

    # ---- XLA-side glue: cast, spatial pad, im2col (K = KH*KW*Cin contraction) ----
    x_pad = jnp.pad(
        x_nchw.astype(compute_dtype),
        ((0, 0), (0, 0), (padding, padding), (padding, padding)),
    )
    taps = []
    for kh in range(KH):
        for kw in range(KW):
            taps.append(
                x_pad[:, :, kh:kh + (Ho - 1) * stride + 1:stride,
                            kw:kw + (Wo - 1) * stride + 1:stride]
            )
    # (N, KH*KW, Cin, Ho, Wo) -> (N, K, M); k index = (kh*KW + kw)*Cin + ci
    patches = jnp.stack(taps, axis=1).reshape(N, K, M)

    # OIHW -> (Cout, KH, KW, Cin) -> (Cout, K), matching the patches' k ordering.
    w2d = jnp.transpose(weight_oihw, (0, 2, 3, 1)).reshape(Cout, K)
    w2d = w2d.astype(compute_dtype)

    # Fold optional conv bias and BN (inference / running-stat form) into one
    # per-channel scale & shift; the whole stage is skipped in the default config.
    apply_affine = bool(bn) or (bias is not None)
    operands = [patches, w2d]
    if apply_affine:
        scale = jnp.ones((Cout,), jnp.float32)
        shift = jnp.zeros((Cout,), jnp.float32)
        if bias is not None:
            shift = shift + bias.astype(jnp.float32).reshape(Cout)
        if bn:
            inv_std = jax.lax.rsqrt(bn_var.astype(jnp.float32) + bn_eps)
            g = bn_gamma.astype(jnp.float32) * inv_std
            shift = (shift - bn_mean.astype(jnp.float32)) * g + bn_beta.astype(jnp.float32)
            scale = scale * g
        operands += [scale.reshape(Cout, 1), shift.reshape(Cout, 1)]

    # ---- M tiling: lane-dense (multiple-of-128) tiles of the spatial axis ----
    vmem_budget = 20 * 1024 * 1024          # conservative vs. v7x 64 MiB/TC
    tile_m = max(128, min(_ceil_to(M, 128), _ceil_to(tile_m_cap, 128)))
    while tile_m > 128 and _est_vmem_bytes(
            K, tile_m, Cout, cdt_size, out_size, apply_affine) > vmem_budget:
        tile_m -= 128
    M_pad = _ceil_to(M, tile_m)
    if M_pad != M:
        patches = jnp.pad(patches, ((0, 0), (0, 0), (0, M_pad - M)))

    grid = (N, M_pad // tile_m)

    in_specs = [
        pl.BlockSpec((1, K, tile_m), lambda n, m: (n, 0, m)),      # patch tile
        pl.BlockSpec((Cout, K), lambda n, m: (0, 0)),              # resident weights
    ]
    if apply_affine:
        in_specs += [
            pl.BlockSpec((Cout, 1), lambda n, m: (0, 0)),
            pl.BlockSpec((Cout, 1), lambda n, m: (0, 0)),
        ]

    est_vmem = _est_vmem_bytes(K, tile_m, Cout, cdt_size, out_size, apply_affine)
    vmem_limit = (
        min(int(1.5 * est_vmem), 48 * 1024 * 1024)
        if est_vmem > 12 * 1024 * 1024 else None
    )

    cost = pl.CostEstimate(
        flops=2 * N * M * Cout * K,
        transcendentals=0,
        bytes_accessed=(N * K * M_pad * cdt_size            # patches read
                        + Cout * K * cdt_size                # weights read
                        + (2 * Cout * 4 if apply_affine else 0)
                        + N * Cout * M_pad * out_size),      # output write
    )

    kernel = functools.partial(
        _conv_matmul_kernel, apply_affine=apply_affine, apply_relu=bool(relu)
    )

    out = pl.pallas_call(
        kernel,
        grid=grid,
        in_specs=in_specs,
        out_specs=pl.BlockSpec((1, Cout, tile_m), lambda n, m: (n, 0, m)),
        out_shape=jax.ShapeDtypeStruct((N, Cout, M_pad), out_dtype),
        compiler_params=pltpu.CompilerParams(
            dimension_semantics=("parallel", "parallel"),
            vmem_limit_bytes=vmem_limit,
        ),
        cost_estimate=cost,
    )(*operands)

    # (N, Cout, Ho*Wo) -> NCHW needs only a slice + reshape (no transpose).
    return out[:, :, :M].reshape(N, Cout, Ho, Wo)


def _reference_forward(x_nchw, weight_oihw, *, stride=1, padding=0, relu=True):
    """Pure-JAX reference (lax conv) for correctness checking."""
    out = jax.lax.conv_general_dilated(
        x_nchw,
        weight_oihw,
        window_strides=(stride, stride),
        padding=[(padding, padding), (padding, padding)],
        dimension_numbers=("NCHW", "OIHW", "NCHW"),
    )
    if relu:
        out = jnp.maximum(out, 0.0)
    return out


if __name__ == "__main__":
    # BasicConv(in_planes=4, out_planes=8, kernel_size=3, padding=1)
    # -> Conv2d(4, 8, 3, stride=1, padding=1, bias=False) + ReLU
    N, Cin, H, W = 2, 4, 16, 16
    Cout, Ksz, pad = 8, 3, 1

    key = jax.random.PRNGKey(0)
    kx, kw, kg, kb, km, kv = jax.random.split(key, 6)
    x = jax.random.normal(kx, (N, Cin, H, W), dtype=jnp.float32)
    weight = 0.1 * jax.random.normal(kw, (Cout, Cin, Ksz, Ksz), dtype=jnp.float32)

    # The kernel feeds bf16 operands to the MXU; compare against a reference built
    # from the same bf16-rounded inputs (both sides accumulate in f32).
    xq = x.astype(jnp.bfloat16).astype(jnp.float32)
    wq = weight.astype(jnp.bfloat16).astype(jnp.float32)

    # 1) default module config: conv (no bias) + ReLU, bn=False
    out = basic_conv_forward(x, weight, stride=1, padding=pad, relu=True, bn=False)
    out = jax.block_until_ready(out)
    ref = _reference_forward(xq, wq, stride=1, padding=pad, relu=True)
    assert out.shape == (N, Cout, H, W), out.shape
    assert jnp.allclose(out, ref, atol=2e-3, rtol=2e-3), float(jnp.max(jnp.abs(out - ref)))

    # 2) bn=True path (inference-form folding of the running statistics)
    gamma = 1.0 + 0.1 * jax.random.normal(kg, (Cout,), jnp.float32)
    beta = 0.1 * jax.random.normal(kb, (Cout,), jnp.float32)
    mean = 0.1 * jax.random.normal(km, (Cout,), jnp.float32)
    var = jnp.abs(1.0 + 0.1 * jax.random.normal(kv, (Cout,), jnp.float32))
    out_bn = basic_conv_forward(
        x, weight, stride=1, padding=pad, relu=True, bn=True,
        bn_gamma=gamma, bn_beta=beta, bn_mean=mean, bn_var=var,
    )
    out_bn = jax.block_until_ready(out_bn)
    conv_ref = _reference_forward(xq, wq, stride=1, padding=pad, relu=False)
    c = lambda v: v.reshape(1, Cout, 1, 1)
    ref_bn = jnp.maximum(
        (conv_ref - c(mean)) / jnp.sqrt(c(var) + 1e-5) * c(gamma) + c(beta), 0.0
    )
    assert jnp.allclose(out_bn, ref_bn, atol=2e-3, rtol=2e-3), float(
        jnp.max(jnp.abs(out_bn - ref_bn))
    )

    # 3) stride=2 (exercises the non-128-multiple spatial size -> padded-lane path)
    out_s2 = basic_conv_forward(x, weight, stride=2, padding=pad, relu=True, bn=False)
    out_s2 = jax.block_until_ready(out_s2)
    ref_s2 = _reference_forward(xq, wq, stride=2, padding=pad, relu=True)
    assert out_s2.shape == ref_s2.shape, (out_s2.shape, ref_s2.shape)
    assert jnp.allclose(out_s2, ref_s2, atol=2e-3, rtol=2e-3), float(
        jnp.max(jnp.abs(out_s2 - ref_s2))
    )

    print("KERNEL_OK")
</pallas_src>

<mosaic_0001>
module attributes {stable_mosaic.version = 11 : i64} {
  func.func @_conv_matmul_kernel(%arg0: i32, %arg1: i32, %arg2: memref<1x36x256xbf16, #tpu.memory_space<vmem>>, %arg3: memref<8x36xbf16, #tpu.memory_space<vmem>>, %arg4: memref<1x8x256xf32, #tpu.memory_space<vmem>>) attributes {dimension_semantics = [#tpu.dimension_semantics<parallel>, #tpu.dimension_semantics<parallel>], iteration_bounds = array<i64: 2, 1>, scalar_prefetch = 0 : i64, scratch_operands = 0 : i64, tpu.core_type = #tpu.core_type<tc>, window_params = [{transform_indices = @transform_0, window_bounds = array<i64: 1, 36, 256>}, {pipeline_mode = #tpu.pipeline_mode<synchronous>, transform_indices = @transform_1, window_bounds = array<i64: 8, 36>}, {transform_indices = @transform_2, window_bounds = array<i64: 1, 8, 256>}]} {
    %c0 = arith.constant 0 : index
    %c0_0 = arith.constant 0 : index
    %0 = vector.load %arg3[%c0, %c0_0] : memref<8x36xbf16, #tpu.memory_space<vmem>>, vector<8x36xbf16>
    %c0_1 = arith.constant 0 : index
    %c0_2 = arith.constant 0 : index
    %c0_3 = arith.constant 0 : index
    %1 = vector.load %arg2[%c0_1, %c0_2, %c0_3] : memref<1x36x256xbf16, #tpu.memory_space<vmem>>, vector<1x36x256xbf16>
    %2 = vector.shape_cast %1 : vector<1x36x256xbf16> to vector<36x256xbf16>
    %cst = arith.constant dense<0.000000e+00> : vector<8x256xf32>
    %3 = tpu.matmul %0, %2, %cst {dimension_numbers = #tpu.dot_dimension_numbers<[1], [0], [0], [1], [0, 0, 1, 1], [], []>} : vector<8x36xbf16>, vector<36x256xbf16>, vector<8x256xf32> -> vector<8x256xf32>
    %cst_4 = arith.constant 0.000000e+00 : f32
    %4 = vector.broadcast %cst_4 : f32 to vector<8x256xf32>
    %5 = arith.maximumf %3, %4 : vector<8x256xf32>
    %c0_5 = arith.constant 0 : index
    %c0_6 = arith.constant 0 : index
    %c0_7 = arith.constant 0 : index
    %6 = vector.load %arg4[%c0_5, %c0_6, %c0_7] : memref<1x8x256xf32, #tpu.memory_space<vmem>>, vector<1x8x256xf32>
    %7 = vector.shape_cast %6 : vector<1x8x256xf32> to vector<8x256xf32>
    %8 = vector.shape_cast %5 : vector<8x256xf32> to vector<1x8x256xf32>
    tpu.vector_store %arg4[%c0_5, %c0_6, %c0_7], %8 {strides = array<i32>} : memref<1x8x256xf32, #tpu.memory_space<vmem>>, vector<1x8x256xf32>,
    return
  }
  func.func @transform_0(%arg0: i32, %arg1: i32) -> (i32, i32, i32) {
    %c0_i32 = arith.constant 0 : i32
    %c0_i32_0 = arith.constant 0 : i32
    return %arg0, %c0_i32, %arg1 : i32, i32, i32
  }
  func.func @transform_1(%arg0: i32, %arg1: i32) -> (i32, i32) {
    %c0_i32 = arith.constant 0 : i32
    %c0_i32_0 = arith.constant 0 : i32
    %c0_i32_1 = arith.constant 0 : i32
    return %c0_i32, %c0_i32_0 : i32, i32
  }
  func.func @transform_2(%arg0: i32, %arg1: i32) -> (i32, i32, i32) {
    %c0_i32 = arith.constant 0 : i32
    %c0_i32_0 = arith.constant 0 : i32
    return %arg0, %c0_i32, %arg1 : i32, i32, i32
  }
}

</mosaic_0001>

<llo_original>
// kernel: tpu_custom_call.1
$region0: #{tpu_custom_call.1}
  #allocation0 [shape = 'u32[]', space=smem, size = 0x4, offset = 0x4, fixed_abs, tag = 'smem constant byte address 0x4 - core index']
  #allocation1 [shape = 'u32[72,128]{1,0:T(1,128)}', space=vmem, size = 0x9000, scoped, tag = 'internal scratch']
  %s0 = inlined_call_operand.vmem [shape: bf16[2,36,256], index: 0, kind: input, shape index: {}]
  %s1 = inlined_call_operand.vmem [shape: bf16[8,36], index: 1, kind: input, shape index: {}]
  %s2 = inlined_call_operand.hbm [shape: f32[2,8,256], index: 2, kind: output, shape index: {}]
  %s3 = sld [smem:[#allocation0]]
  $region41: #{tpu_custom_call.1} parent=0
    _
  %s5 = ssub.s32 1, %s3
  %s6 = scalar_select 0, %s5, %s3
  $region1: #{tpu_custom_call.1} parent=0
    #allocation2 [shape = 'u8[16384]{0}', space=vmem, size = 0x4000, scoped, tag = 'output window, operand 0']
    #allocation3 [shape = 's32[2]{0}', space=sflag, size = 0x8, scoped, tag = 'scoped memory for tpu_custom_call.1']
    %7 = vsyncpa [#allocation3], 0
    %s8 = scalar_lea.sflag [#allocation3], 1
    %9 = vsyncpa %s8, 0
    loop: start=0, step=1, limit=4
    $region2: #{tpu_custom_call.1} parent=1 // loop_pre_header
      _
    $region3: #{tpu_custom_call.1} parent=1 // loop_header
      %s11 = sphi 0, %s15
      %p12 = scmp.ge.s32.totalorder %s11, 4
      %s18 = sphi 0, %s30
      %s19 = sphi 0, %s26
      %s20 = sphi 0, %s18
      %s21 = sphi 0, %s19
      %s22 = sphi 0, %s20
      %s23 = sphi 0, %s21
      %s35 = sphi 0, %s37
      %s38 = sphi 0, %s35
      %s39 = sphi 0, %s38
      %s55 = sphi 0, %s39
      %s59 = sphi 0, %s59
      %s61 = sphi 0, %s59
      %s62 = sphi 0, %s61
      %s76 = sphi 0, %s62
      %s84 = sphi 0, %s86
      %s87 = sphi 0, %s84
      %s88 = sphi 0, %s87
      %s104 = sphi 0, %s88
    $region4: #{tpu_custom_call.1} parent=1 // loop_header_branch
      %14 = sbr.rel (%p12) target = $region8
    $region5: #{tpu_custom_call.1} parent=1 // loop_body
      %s16 = ssub.s32 %s11, 1
      %s17 = ssub.s32 %s11, 2
      %s24 = sadd.s32 1, %s19
      %p25 = scmp.ge.s32.totalorder %s24, 1
      %s26 = scalar_select %p25, 0, %s24
      %s27 = sadd.s32 1, %s18
      %s28 = scalar_select %p25, %s27, %s18
      %p29 = scmp.ge.s32.totalorder %s28, 2
      %s30 = scalar_select %p29, 0, %s28
      %s31 = ssub.s32 %s18, %s30
      %s32 = ssub.s32 %s19, %s26
      %s33 = sor.u32 %s31, %s32
      %p34 = scmp.eq.s32.totalorder %s33, 0
      %s36 = sadd.s32 %s35, 1
      %s37 = scalar_select %p34, %s35, %s36
      %p40 = pneg %p34
      %p41 = scmp.eq.s32.totalorder %s11, 1
      %p42 = por %p40, %p41
      %p43 = scmp.ne.s32.totalorder %s35, %s38
      %p44 = scmp.eq.s32.totalorder %s11, 0
      %p45 = por %p43, %p44
      %p46 = scmp.ne.s32.totalorder %s35, %s38
      %p47 = scmp.eq.s32.totalorder %s16, 1
      %p48 = por %p46, %p47
      %p49 = scmp.ne.s32.totalorder %s38, %s39
      %p50 = scmp.eq.s32.totalorder %s16, 0
      %p51 = por %p49, %p50
      %p52 = scmp.ne.s32.totalorder %s38, %s39
      %p53 = scmp.eq.s32.totalorder %s17, 1
      %p54 = por %p52, %p53
      %p56 = scmp.ne.s32.totalorder %s39, %s55
      %p57 = scmp.eq.s32.totalorder %s17, 0
      %p58 = por %p56, %p57
      %s60 = sadd.s32 %s59, 1
      %p63 = scmp.eq.s32.totalorder %s11, 1
      %p64 = scmp.ne.s32.totalorder %s59, %s61
      %p65 = scmp.eq.s32.totalorder %s11, 0
      %p66 = por %p64, %p65
      %p67 = scmp.ne.s32.totalorder %s59, %s61
      %p68 = scmp.eq.s32.totalorder %s16, 1
      %p69 = por %p67, %p68
      %p70 = scmp.ne.s32.totalorder %s61, %s62
      %p71 = scmp.eq.s32.totalorder %s16, 0
      %p72 = por %p70, %p71
      %p73 = scmp.ne.s32.totalorder %s61, %s62
      %p74 = scmp.eq.s32.totalorder %s17, 1
      %p75 = por %p73, %p74
      %p77 = scmp.ne.s32.totalorder %s62, %s76
      %p78 = scmp.eq.s32.totalorder %s17, 0
      %p79 = por %p77, %p78
      %s80 = ssub.s32 %s18, %s30
      %s81 = ssub.s32 %s19, %s26
      %s82 = sor.u32 %s80, %s81
      %p83 = scmp.eq.s32.totalorder %s82, 0
      %s85 = sadd.s32 %s84, 1
      %s86 = scalar_select %p83, %s84, %s85
      %p89 = pneg %p83
      %p90 = scmp.eq.s32.totalorder %s11, 1
      %p91 = por %p89, %p90
      %p92 = scmp.ne.s32.totalorder %s84, %s87
      %p93 = scmp.eq.s32.totalorder %s11, 0
      %p94 = por %p92, %p93
      %p95 = scmp.ne.s32.totalorder %s84, %s87
      %p96 = scmp.eq.s32.totalorder %s16, 1
      %p97 = por %p95, %p96
      %p98 = scmp.ne.s32.totalorder %s87, %s88
      %p99 = scmp.eq.s32.totalorder %s16, 0
      %p100 = por %p98, %p99
      %p101 = scmp.ne.s32.totalorder %s87, %s88
      %p102 = scmp.eq.s32.totalorder %s17, 1
      %p103 = por %p101, %p102
      %p105 = scmp.ne.s32.totalorder %s88, %s104
      %p106 = scmp.eq.s32.totalorder %s17, 0
      %p107 = por %p105, %p106
      %p108 = scmp.le.s32.totalorder 1, %s11
      %p109 = scmp.lt.s32.totalorder %s11, 3
      %p110 = pnand %p108, %p109
      %p111 = pneg %p110
      // Predicated region
      $region9: #{tpu_custom_call.1} parent=5 // pred_check
        _
      $region10: #{tpu_custom_call.1} parent=5 // pred_check_branch
        %113 = sbr.rel (%p110) target = $region12
      $region11: #{tpu_custom_call.1} parent=5 // pred_region
        %s114 = ssub.s32 %s11, 1
        // Predicated region
        $region13: #{tpu_custom_call.1} parent=11 // pred_check
          %p115 = pneg %p72
        $region14: #{tpu_custom_call.1} parent=11 // pred_check_branch
          %117 = sbr.rel (%p115) target = $region16
        $region15: #{tpu_custom_call.1} parent=11 // pred_region
          _
        $region16: #{tpu_custom_call.1} parent=11 // pred_fallthru
          _
      $region12: #{tpu_custom_call.1} parent=5 // pred_fallthru
        _
      %p118 = scmp.lt.s32.totalorder %s11, 2
      // Predicated region
      $region17: #{tpu_custom_call.1} parent=5 // pred_check
        %p119 = pneg %p118
      $region18: #{tpu_custom_call.1} parent=5 // pred_check_branch
        %121 = sbr.rel (%p119) target = $region20
      $region19: #{tpu_custom_call.1} parent=5 // pred_region
        // Predicated region
        $region21: #{tpu_custom_call.1} parent=19 // pred_check
          %p122 = pneg %p45
        $region22: #{tpu_custom_call.1} parent=19 // pred_check_branch
          %124 = sbr.rel (%p122) target = $region24
        $region23: #{tpu_custom_call.1} parent=19 // pred_region
          %s125 = smul.u32 2, %s19
          %p126 = scmp.lt.s32.totalorder %s18, 1
          %s127 = scalar_select %p126, %s18, 1
          %p128 = scmp.lt.s32.totalorder %s125, 1
          %s129 = scalar_select %p128, %s125, 1
          %s130 = smul.addr %s127, 10
          %s131 = sadd.s32 %s129, %s130
          %s132 = smul.addr %s131, 4
          %s133 = scalar_lea.vmem %s0, %s132
          %s134 = smul.u32 2, %s19
        $region24: #{tpu_custom_call.1} parent=19 // pred_fallthru
          _
      $region20: #{tpu_custom_call.1} parent=5 // pred_fallthru
        _
      %p135 = scmp.le.s32.totalorder 1, %s11
      %p136 = scmp.lt.s32.totalorder %s11, 3
      %p137 = pnand %p135, %p136
      %p138 = pneg %p137
      // Predicated region
      $region25: #{tpu_custom_call.1} parent=5 // pred_check
        _
      $region26: #{tpu_custom_call.1} parent=5 // pred_check_branch
        %140 = sbr.rel (%p137) target = $region28
      $region27: #{tpu_custom_call.1} parent=5 // pred_region
        %s141 = ssub.s32 %s11, 1
        %s142 = smul.u32 2, %s21
        %p143 = scmp.lt.s32.totalorder %s20, 1
        %s144 = scalar_select %p143, %s20, 1
        %p145 = scmp.lt.s32.totalorder %s142, 1
        %s146 = scalar_select %p145, %s142, 1
        %s147 = smul.addr %s144, 10
        %s148 = sadd.s32 %s146, %s147
        %s149 = smul.addr %s148, 4
        %s150 = scalar_lea.vmem %s0, %s149
        %p151 = pneg %p51
        %p152 = pneg %p48
        %p153 = pneg %p72
        %p154 = pneg %p69
        %p155 = pneg %p100
        %p156 = pneg %p97
        %s157 = sand.u32 %s87, 1
        %s158 = scalar_lea.sflag [#allocation3], %s157
        %s159 = sand.u32 %s87, 1
        %s160 = smul.addr %s159, 16
        %s161 = scalar_lea.vmem [#allocation2], %s160
        %s162 = smul.u32 2, %s21
        %p163 = scmp.lt.s32.totalorder %s20, 1
        %s164 = scalar_select %p163, %s20, 1
        %p165 = scmp.lt.s32.totalorder %s162, 1
        %s166 = scalar_select %p165, %s162, 1
        %s167 = smul.addr %s164, 10
        %s168 = sadd.s32 %s166, %s167
        %s169 = smul.addr %s168, 4
        %s170 = scalar_lea.vmem %s0, %s169
        %s171 = smul.u32 2, %s21
        %s172 = smul.u32 2, %s21
        %v174 = vld [vmem:[%s1] sm:$0xf]
        %v175 = vld [vmem:[%s170] sm:$0xff]
        %v176 = vld [vmem:[%s170 + $0x8] sm:$0xff]
        %v177 = vld [vmem:[%s170 + $0x10] sm:$0xff]
        %v178 = vld [vmem:[%s170 + $0x18] sm:$0xff]
        %v179 = vld [vmem:[%s170 + $0x20] sm:$0x33]
        %v185 = vunpack.c.l.b16 %v175
        %v186 = vunpack.c.h.b16 %v175
        %v187 = vunpack.c.l.b16 %v176
        %v188 = vunpack.c.h.b16 %v176
        %v189 = vunpack.c.l.b16 %v177
        %v190 = vunpack.c.h.b16 %v177
        %v191 = vunpack.c.l.b16 %v178
        %v192 = vunpack.c.h.b16 %v178
        %v193 = vunpack.c.l.b16 %v179
        %v194 = vunpack.c.h.b16 %v179
        %v195 = vpack.c.b16 %v187, %v185
        %v196 = vpack.c.b16 %v188, %v186
        %v197 = vpack.c.b16 %v191, %v189
        %v198 = vpack.c.b16 %v192, %v190
        %v199 = vpack.c.b16 %v193, %v193
        %v200 = vpack.c.b16 %v194, %v194
        %vm205 = vcmask 293888
        %v207 = vsel %vm205, %v174, 0
        %vm209 = vcmask 1041408
        %v211 = vsel %vm209, %v199, 0
        %v214 = vsel %vm209, %v200, 0
        %216 = vmatpush.bf16.msra.mxu0 0
        %217 = vmatpush.bf16.msra.mxu0 0
        %218 = vmatpush.bf16.msra.mxu0 0
        %219 = vmatpush.bf16.msra.mxu0 0
        %220 = vmatpush.bf16.msra.mxu0 0
        %221 = vmatpush.bf16.msra.mxu0 %v211
        %222 = vmatpush.bf16.msra.mxu0 %v197
        %223 = vmatpush.bf16.msra.mxu0 %v195
        %224 = vmatmul.bf16.gmra.mxu0 %v207
        %v225 = vpop.f32.mrf.mxu0
        %v226 = vadd.f32 0.0, %v225
        %v227 = vpop.f32.mrf.mxu0
        %228 = vdwg.mxu0
        %229 = vmatpush.bf16.msra.mxu0 0
        %230 = vmatpush.bf16.msra.mxu0 0
        %231 = vmatpush.bf16.msra.mxu0 0
        %232 = vmatpush.bf16.msra.mxu0 0
        %233 = vmatpush.bf16.msra.mxu0 0
        %234 = vmatpush.bf16.msra.mxu0 %v214
        %235 = vmatpush.bf16.msra.mxu0 %v198
        %236 = vmatpush.bf16.msra.mxu0 %v196
        %237 = vmatmul.bf16.gmra.mxu0 %v207
        %v238 = vpop.f32.mrf.mxu0
        %v239 = vadd.f32 0.0, %v238
        %v240 = vpop.f32.mrf.mxu0
        %241 = vdwg.mxu0
        %v242 = vmax.f32 %v226, 0.0
        %v243 = vmax.f32 %v239, 0.0
        %244 = vst [vmem:[%s161] sm:$0xff] %v242
        %245 = vst [vmem:[%s161 + $0x8] sm:$0xff] %v243
        %s246 = sand.u32 %s87, 1
        %s247 = scalar_lea.sflag [#allocation3], %s246
        %s248 = sand.u32 %s87, 1
        %s249 = smul.addr %s248, 16
        %s250 = scalar_lea.vmem [#allocation2], %s249
        // Predicated region
        $region29: #{tpu_custom_call.1} parent=27 // pred_check
          %p251 = pneg %p97
        $region30: #{tpu_custom_call.1} parent=27 // pred_check_branch
          %253 = sbr.rel (%p251) target = $region32
        $region31: #{tpu_custom_call.1} parent=27 // pred_region
          %s254 = smul.u32 2, %s21
          %256 = vsyncadd %s247, 0
          %s257 = smul.addr %s20, 2
          %s258 = sadd.s32 %s254, %s257
          %s259 = smul.addr %s258, 8
          %s260 = scalar_lea.hbm %s2, %s259
          %s262 = sshll.u32 %s250, 4
          %s263 = int_to_ptr.vmem [resolvable:$true] %s262
          %s264 = sshll.u32 %s260, 4
          %s265 = int_to_ptr.hbm [resolvable:$true] %s264
          %267 = dma.vmem_to_hbm [thread:$0]  %s263, 256, %s265, %s247
        $region32: #{tpu_custom_call.1} parent=27 // pred_fallthru
          _
      $region28: #{tpu_custom_call.1} parent=5 // pred_fallthru
        _
      %p268 = scmp.le.s32.totalorder 2, %s11
      // Predicated region
      $region33: #{tpu_custom_call.1} parent=5 // pred_check
        %p269 = pneg %p268
      $region34: #{tpu_custom_call.1} parent=5 // pred_check_branch
        %271 = sbr.rel (%p269) target = $region36
      $region35: #{tpu_custom_call.1} parent=5 // pred_region
        %s272 = ssub.s32 %s11, 2
        // Predicated region
        $region37: #{tpu_custom_call.1} parent=35 // pred_check
          %p273 = pneg %p103
        $region38: #{tpu_custom_call.1} parent=35 // pred_check_branch
          %275 = sbr.rel (%p273) target = $region40
        $region39: #{tpu_custom_call.1} parent=35 // pred_region
          %s276 = sand.u32 %s88, 1
          %s277 = scalar_lea.sflag [#allocation3], %s276
          %s278 = sand.u32 %s88, 1
          %s279 = smul.addr %s278, 16
          %s280 = scalar_lea.vmem [#allocation2], %s279
          %282 = dma.done %s277, 256
        $region40: #{tpu_custom_call.1} parent=35 // pred_fallthru
          _
      $region36: #{tpu_custom_call.1} parent=5 // pred_fallthru
        _
    $region6: #{tpu_custom_call.1} parent=1 // loop_footer
      %s15 = sadd.s32 1, %s11
    $region7: #{tpu_custom_call.1} parent=1 // loop_footer_branch
      %10 = sbr.rel target = $region3
    $region8: #{tpu_custom_call.1} parent=1 // loop_exit
      _
    %283 = vsyncpa [#allocation3], 1
    %s284 = scalar_lea.sflag [#allocation3], 1
    %285 = vsyncpa %s284, 1

</llo_original>
